<compile_context>
chip_gen: v5e
topology: v5e:2x2
jax: 0.10.0
libtpu: 0.0.40
codegen_flags: <defaults>
</compile_context>

<pallas_src>
import functools

import jax
import jax.numpy as jnp
from jax.experimental import pallas as pl
from jax.experimental.pallas import tpu as pltpu

LANE = 128          # lane width
CLASS_PAD = 8       # pad num_classes up to a multiple of 8 (sublane width)
TILE_B_MAX = 4096   # max batch rows per grid step (multiple of 128)


def _cdiv(a, b):
    return (a + b - 1) // b


def _round_up(n, m):
    return _cdiv(n, m) * m


def mlp_kernel(x_ref,
               w1_ref, b1_ref,
               w2_ref, b2_ref,
               w3_ref, b3_ref,
               w4t_ref, b4t_ref,
               o_ref):
    # Layer 1: Linear(8 -> 128) + ReLU, all-f32 (K=8 -> negligible MXU work,
    # keeps input-side precision close to PyTorch f32 semantics).
    h = jnp.dot(x_ref[...], w1_ref[...], preferred_element_type=jnp.float32)
    h = jnp.maximum(h + b1_ref[...], 0.0).astype(jnp.bfloat16)

    # Layer 2: Linear(128 -> 128) + ReLU (bf16 MXU, f32 accumulate + epilogue).
    h = jnp.dot(h, w2_ref[...], preferred_element_type=jnp.float32)
    h = jnp.maximum(h + b2_ref[...], 0.0).astype(jnp.bfloat16)

    # Layer 3: Linear(128 -> 128) + ReLU.
    h = jnp.dot(h, w3_ref[...], preferred_element_type=jnp.float32)
    h = jnp.maximum(h + b3_ref[...], 0.0).astype(jnp.bfloat16)

    # Output layer, computed transposed: logits_T[c, i] = sum_k W4t[c, k] h[i, k].
    # NT matmul on the MXU (contraction on the trailing dims of both operands),
    # so the result is already a lane-dense (class_pad, tile_b) block and the
    # store needs no XLU transpose / reshape.
    out_t = jax.lax.dot_general(
        w4t_ref[...], h, (((1,), (1,)), ((), ())),
        preferred_element_type=jnp.float32)
    out_t = out_t + b4t_ref[...]                 # bias broadcast along lanes
    o_ref[...] = out_t.astype(o_ref.dtype)       # bf16 writeback


def prepare_params(params):
    """One-time weight prep (hoisted out of the per-call path): bf16 casts,
    class padding to a multiple of 8, and the final-layer transpose."""
    (w1, b1), (w2, b2), (w3, b3), (w4, b4) = params
    hidden = w4.shape[0]
    num_classes = w4.shape[1]
    ncp = _round_up(max(num_classes, 1), CLASS_PAD)

    w4t = jnp.zeros((ncp, hidden), jnp.bfloat16)
    w4t = w4t.at[:num_classes, :].set(w4.T.astype(jnp.bfloat16))
    b4t = jnp.zeros((ncp, 1), jnp.float32)
    b4t = b4t.at[:num_classes, 0].set(b4.reshape(-1).astype(jnp.float32))

    prep = (
        w1.astype(jnp.float32), b1.reshape(1, -1).astype(jnp.float32),
        w2.astype(jnp.bfloat16), b2.reshape(1, -1).astype(jnp.float32),
        w3.astype(jnp.bfloat16), b3.reshape(1, -1).astype(jnp.float32),
        w4t, b4t,
    )
    return prep, num_classes


def _choose_batch_tiling(B):
    # Lane-dense output even for tiny batches (>=128 rows), and an even (>=2)
    # number of tiles so v7x can shard the batch axis across both TensorCores.
    b_min = max(_round_up(B, 8), LANE)
    n_tiles = max(2, _cdiv(b_min, TILE_B_MAX))
    n_tiles += n_tiles % 2
    tile_b = _round_up(_cdiv(b_min, n_tiles), LANE)
    return tile_b, n_tiles * tile_b


@functools.partial(jax.jit, static_argnames=("num_classes",))
def deep_network_forward(x, prep, *, num_classes):
    """x: [B, input_dim] f32; prep from prepare_params -> logits [B, num_classes] f32."""
    w1, b1, w2, b2, w3, b3, w4t, b4t = prep
    B, input_dim = x.shape
    ncp = w4t.shape[0]

    tile_b, b_pad = _choose_batch_tiling(B)
    if b_pad != B:
        x = jnp.pad(x, ((0, b_pad - B), (0, 0)))

    def resident(arr):
        # Whole array as one block, same block every step -> stays VMEM-resident.
        return pl.BlockSpec(arr.shape, lambda i: (0, 0))

    out_t = pl.pallas_call(
        mlp_kernel,
        out_shape=jax.ShapeDtypeStruct((ncp, b_pad), jnp.bfloat16),
        grid=(b_pad // tile_b,),
        in_specs=[
            pl.BlockSpec((tile_b, input_dim), lambda i: (i, 0)),  # x: tiled over batch
            resident(w1), resident(b1),
            resident(w2), resident(b2),
            resident(w3), resident(b3),
            resident(w4t), resident(b4t),
        ],
        out_specs=pl.BlockSpec((ncp, tile_b), lambda i: (0, i)),   # transposed logits
        compiler_params=pltpu.CompilerParams(
            dimension_semantics=("parallel",),   # shard batch tiles across TCs on v7x
        ),
    )(x, w1, b1, w2, b2, w3, b3, w4t, b4t)

    # Tiny unpack: only the (num_classes, B) corner is touched (~B*num_classes elems).
    return out_t[:num_classes, :B].T.astype(jnp.float32)


def init_params(key, input_dim=8, hidden_dims=(128, 128, 128), num_classes=5):
    """Deterministic init mimicking PyTorch nn.Linear default (U[-1/sqrt(fan_in), +1/sqrt(fan_in)])."""
    dims = [input_dim] + list(hidden_dims) + [num_classes]
    params = []
    for i in range(len(dims) - 1):
        fan_in, fan_out = dims[i], dims[i + 1]
        key, kw, kb = jax.random.split(key, 3)
        bound = 1.0 / jnp.sqrt(fan_in)
        w = jax.random.uniform(kw, (fan_in, fan_out), jnp.float32, -bound, bound)
        b = jax.random.uniform(kb, (1, fan_out), jnp.float32, -bound, bound)
        params.append((w, b))
    return params


def reference_forward_matched(x, params):
    """Pure-JAX reference matching the kernel's mixed precision:
    f32 layer 1, bf16 weights/activations for layers 2-4 with f32 accumulation,
    bf16 output."""
    (w1, b1), (w2, b2), (w3, b3), (w4, b4) = params
    h = jnp.dot(x, w1, preferred_element_type=jnp.float32,
                precision=jax.lax.Precision.HIGHEST) + b1
    h = jnp.maximum(h, 0.0).astype(jnp.bfloat16)
    h = jnp.dot(h, w2.astype(jnp.bfloat16), preferred_element_type=jnp.float32) + b2
    h = jnp.maximum(h, 0.0).astype(jnp.bfloat16)
    h = jnp.dot(h, w3.astype(jnp.bfloat16), preferred_element_type=jnp.float32) + b3
    h = jnp.maximum(h, 0.0).astype(jnp.bfloat16)
    out = jnp.dot(h, w4.astype(jnp.bfloat16), preferred_element_type=jnp.float32) + b4
    return out.astype(jnp.bfloat16).astype(jnp.float32)


def reference_forward_f32(x, params):
    """Pure-f32 reference (PyTorch-equivalent semantics)."""
    h = x
    for i, (w, b) in enumerate(params):
        h = h @ w + b
        if i < len(params) - 1:
            h = jnp.maximum(h, 0.0)
    return h


if __name__ == "__main__":
    key = jax.random.PRNGKey(0)
    key, kx, kx2 = jax.random.split(key, 3)

    input_dim = 8
    num_classes = 5
    params = init_params(key, input_dim=input_dim,
                         hidden_dims=(128, 128, 128), num_classes=num_classes)
    prep, nc = prepare_params(params)

    # Small-shape check.
    batch = 8
    x = jax.random.normal(kx, (batch, input_dim), jnp.float32)
    out = jax.block_until_ready(deep_network_forward(x, prep, num_classes=nc))
    assert out.shape == (batch, num_classes), out.shape
    ref_m = reference_forward_matched(x, params)
    ref_f = reference_forward_f32(x, params)
    assert jnp.allclose(out, ref_m, atol=2e-2, rtol=2e-2), "mismatch vs mixed-precision reference"
    assert jnp.allclose(out, ref_f, atol=5e-2, rtol=5e-2), "mismatch vs f32 reference"

    # Multi-tile check (exercises batch padding and the 2-tile parallel grid).
    batch2 = 300  # -> tile_b = 256, grid = (2,), padded to 512 rows
    x2 = jax.random.normal(kx2, (batch2, input_dim), jnp.float32)
    out2 = jax.block_until_ready(deep_network_forward(x2, prep, num_classes=nc))
    assert out2.shape == (batch2, num_classes), out2.shape
    ref2 = reference_forward_matched(x2, params)
    assert jnp.allclose(out2, ref2, atol=2e-2, rtol=2e-2), "mismatch vs reference (multi-tile)"

    print("KERNEL_OK")
</pallas_src>

<mosaic_0001>
module attributes {stable_mosaic.version = 11 : i64} {
  func.func @mlp_kernel(%arg0: i32, %arg1: memref<128x8xf32, #tpu.memory_space<vmem>>, %arg2: memref<8x128xf32, #tpu.memory_space<vmem>>, %arg3: memref<1x128xf32, #tpu.memory_space<vmem>>, %arg4: memref<128x128xbf16, #tpu.memory_space<vmem>>, %arg5: memref<1x128xf32, #tpu.memory_space<vmem>>, %arg6: memref<128x128xbf16, #tpu.memory_space<vmem>>, %arg7: memref<1x128xf32, #tpu.memory_space<vmem>>, %arg8: memref<8x128xbf16, #tpu.memory_space<vmem>>, %arg9: memref<8x1xf32, #tpu.memory_space<vmem>>, %arg10: memref<8x128xbf16, #tpu.memory_space<vmem>>) attributes {dimension_semantics = [#tpu.dimension_semantics<parallel>], iteration_bounds = array<i64: 2>, scalar_prefetch = 0 : i64, scratch_operands = 0 : i64, tpu.core_type = #tpu.core_type<tc>, window_params = [{transform_indices = @transform_0, window_bounds = array<i64: 128, 8>}, {pipeline_mode = #tpu.pipeline_mode<synchronous>, transform_indices = @transform_1, window_bounds = array<i64: 8, 128>}, {pipeline_mode = #tpu.pipeline_mode<synchronous>, transform_indices = @transform_2, window_bounds = array<i64: 1, 128>}, {pipeline_mode = #tpu.pipeline_mode<synchronous>, transform_indices = @transform_3, window_bounds = array<i64: 128, 128>}, {pipeline_mode = #tpu.pipeline_mode<synchronous>, transform_indices = @transform_4, window_bounds = array<i64: 1, 128>}, {pipeline_mode = #tpu.pipeline_mode<synchronous>, transform_indices = @transform_5, window_bounds = array<i64: 128, 128>}, {pipeline_mode = #tpu.pipeline_mode<synchronous>, transform_indices = @transform_6, window_bounds = array<i64: 1, 128>}, {pipeline_mode = #tpu.pipeline_mode<synchronous>, transform_indices = @transform_7, window_bounds = array<i64: 8, 128>}, {pipeline_mode = #tpu.pipeline_mode<synchronous>, transform_indices = @transform_8, window_bounds = array<i64: 8, 1>}, {transform_indices = @transform_9, window_bounds = array<i64: 8, 128>}]} {
    %c0 = arith.constant 0 : index
    %c0_0 = arith.constant 0 : index
    %0 = vector.load %arg1[%c0, %c0_0] : memref<128x8xf32, #tpu.memory_space<vmem>>, vector<128x8xf32>
    %c0_1 = arith.constant 0 : index
    %c0_2 = arith.constant 0 : index
    %1 = vector.load %arg2[%c0_1, %c0_2] : memref<8x128xf32, #tpu.memory_space<vmem>>, vector<8x128xf32>
    %cst = arith.constant dense<0.000000e+00> : vector<128x128xf32>
    %2 = tpu.matmul %0, %1, %cst {dimension_numbers = #tpu.dot_dimension_numbers<[1], [0], [0], [1], [0, 0, 1, 1], [], []>} : vector<128x8xf32>, vector<8x128xf32>, vector<128x128xf32> -> vector<128x128xf32>
    %c0_3 = arith.constant 0 : index
    %c0_4 = arith.constant 0 : index
    %3 = vector.load %arg3[%c0_3, %c0_4] : memref<1x128xf32, #tpu.memory_space<vmem>>, vector<1x128xf32>
    %4 = vector.broadcast %3 : vector<1x128xf32> to vector<128x128xf32>
    %5 = arith.addf %2, %4 : vector<128x128xf32>
    %cst_5 = arith.constant 0.000000e+00 : f32
    %6 = vector.broadcast %cst_5 : f32 to vector<128x128xf32>
    %7 = arith.maximumf %5, %6 : vector<128x128xf32>
    %8 = arith.truncf %7 : vector<128x128xf32> to vector<128x128xbf16>
    %c0_6 = arith.constant 0 : index
    %c0_7 = arith.constant 0 : index
    %9 = vector.load %arg4[%c0_6, %c0_7] : memref<128x128xbf16, #tpu.memory_space<vmem>>, vector<128x128xbf16>
    %cst_8 = arith.constant dense<0.000000e+00> : vector<128x128xf32>
    %10 = tpu.matmul %8, %9, %cst_8 {dimension_numbers = #tpu.dot_dimension_numbers<[1], [0], [0], [1], [0, 0, 1, 1], [], []>} : vector<128x128xbf16>, vector<128x128xbf16>, vector<128x128xf32> -> vector<128x128xf32>
    %c0_9 = arith.constant 0 : index
    %c0_10 = arith.constant 0 : index
    %11 = vector.load %arg5[%c0_9, %c0_10] : memref<1x128xf32, #tpu.memory_space<vmem>>, vector<1x128xf32>
    %12 = vector.broadcast %11 : vector<1x128xf32> to vector<128x128xf32>
    %13 = arith.addf %10, %12 : vector<128x128xf32>
    %cst_11 = arith.constant 0.000000e+00 : f32
    %14 = vector.broadcast %cst_11 : f32 to vector<128x128xf32>
    %15 = arith.maximumf %13, %14 : vector<128x128xf32>
    %16 = arith.truncf %15 : vector<128x128xf32> to vector<128x128xbf16>
    %c0_12 = arith.constant 0 : index
    %c0_13 = arith.constant 0 : index
    %17 = vector.load %arg6[%c0_12, %c0_13] : memref<128x128xbf16, #tpu.memory_space<vmem>>, vector<128x128xbf16>
    %cst_14 = arith.constant dense<0.000000e+00> : vector<128x128xf32>
    %18 = tpu.matmul %16, %17, %cst_14 {dimension_numbers = #tpu.dot_dimension_numbers<[1], [0], [0], [1], [0, 0, 1, 1], [], []>} : vector<128x128xbf16>, vector<128x128xbf16>, vector<128x128xf32> -> vector<128x128xf32>
    %c0_15 = arith.constant 0 : index
    %c0_16 = arith.constant 0 : index
    %19 = vector.load %arg7[%c0_15, %c0_16] : memref<1x128xf32, #tpu.memory_space<vmem>>, vector<1x128xf32>
    %20 = vector.broadcast %19 : vector<1x128xf32> to vector<128x128xf32>
    %21 = arith.addf %18, %20 : vector<128x128xf32>
    %cst_17 = arith.constant 0.000000e+00 : f32
    %22 = vector.broadcast %cst_17 : f32 to vector<128x128xf32>
    %23 = arith.maximumf %21, %22 : vector<128x128xf32>
    %24 = arith.truncf %23 : vector<128x128xf32> to vector<128x128xbf16>
    %c0_18 = arith.constant 0 : index
    %c0_19 = arith.constant 0 : index
    %25 = vector.load %arg8[%c0_18, %c0_19] : memref<8x128xbf16, #tpu.memory_space<vmem>>, vector<8x128xbf16>
    %cst_20 = arith.constant dense<0.000000e+00> : vector<8x128xf32>
    %26 = tpu.matmul %25, %24, %cst_20 {dimension_numbers = #tpu.dot_dimension_numbers<[1], [1], [0], [0], [0, 0, 1, 0], [], []>} : vector<8x128xbf16>, vector<128x128xbf16>, vector<8x128xf32> -> vector<8x128xf32>
    %c0_21 = arith.constant 0 : index
    %c0_22 = arith.constant 0 : index
    %27 = vector.load %arg9[%c0_21, %c0_22] : memref<8x1xf32, #tpu.memory_space<vmem>>, vector<8x1xf32>
    %28 = vector.broadcast %27 : vector<8x1xf32> to vector<8x128xf32>
    %29 = arith.addf %26, %28 : vector<8x128xf32>
    %30 = arith.truncf %29 : vector<8x128xf32> to vector<8x128xbf16>
    %c0_23 = arith.constant 0 : index
    %c0_24 = arith.constant 0 : index
    %31 = vector.load %arg10[%c0_23, %c0_24] : memref<8x128xbf16, #tpu.memory_space<vmem>>, vector<8x128xbf16>
    tpu.vector_store %arg10[%c0_23, %c0_24], %30 {strides = array<i32>} : memref<8x128xbf16, #tpu.memory_space<vmem>>, vector<8x128xbf16>,
    return
  }
  func.func @transform_0(%arg0: i32) -> (i32, i32) {
    %c0_i32 = arith.constant 0 : i32
    %c0_i32_0 = arith.constant 0 : i32
    return %arg0, %c0_i32 : i32, i32
  }
  func.func @transform_1(%arg0: i32) -> (i32, i32) {
    %c0_i32 = arith.constant 0 : i32
    %c0_i32_0 = arith.constant 0 : i32
    %c0_i32_1 = arith.constant 0 : i32
    return %c0_i32, %c0_i32_0 : i32, i32
  }
  func.func @transform_2(%arg0: i32) -> (i32, i32) {
    %c0_i32 = arith.constant 0 : i32
    %c0_i32_0 = arith.constant 0 : i32
    %c0_i32_1 = arith.constant 0 : i32
    return %c0_i32, %c0_i32_0 : i32, i32
  }
  func.func @transform_3(%arg0: i32) -> (i32, i32) {
    %c0_i32 = arith.constant 0 : i32
    %c0_i32_0 = arith.constant 0 : i32
    %c0_i32_1 = arith.constant 0 : i32
    return %c0_i32, %c0_i32_0 : i32, i32
  }
  func.func @transform_4(%arg0: i32) -> (i32, i32) {
    %c0_i32 = arith.constant 0 : i32
    %c0_i32_0 = arith.constant 0 : i32
    %c0_i32_1 = arith.constant 0 : i32
    return %c0_i32, %c0_i32_0 : i32, i32
  }
  func.func @transform_5(%arg0: i32) -> (i32, i32) {
    %c0_i32 = arith.constant 0 : i32
    %c0_i32_0 = arith.constant 0 : i32
    %c0_i32_1 = arith.constant 0 : i32
    return %c0_i32, %c0_i32_0 : i32, i32
  }
  func.func @transform_6(%arg0: i32) -> (i32, i32) {
    %c0_i32 = arith.constant 0 : i32
    %c0_i32_0 = arith.constant 0 : i32
    %c0_i32_1 = arith.constant 0 : i32
    return %c0_i32, %c0_i32_0 : i32, i32
  }
  func.func @transform_7(%arg0: i32) -> (i32, i32) {
    %c0_i32 = arith.constant 0 : i32
    %c0_i32_0 = arith.constant 0 : i32
    %c0_i32_1 = arith.constant 0 : i32
    return %c0_i32, %c0_i32_0 : i32, i32
  }
  func.func @transform_8(%arg0: i32) -> (i32, i32) {
    %c0_i32 = arith.constant 0 : i32
    %c0_i32_0 = arith.constant 0 : i32
    %c0_i32_1 = arith.constant 0 : i32
    return %c0_i32, %c0_i32_0 : i32, i32
  }
  func.func @transform_9(%arg0: i32) -> (i32, i32) {
    %c0_i32 = arith.constant 0 : i32
    %c0_i32_0 = arith.constant 0 : i32
    return %c0_i32, %arg0 : i32, i32
  }
}

</mosaic_0001>

<llo_original>
// kernel: deep_network_forward.1
$region0: #{deep_network_forward.1}
  #allocation0 [shape = 'u32[]', space=smem, size = 0x4, offset = 0x4, fixed_abs, tag = 'smem constant byte address 0x4 - core index']
  #allocation1 [shape = 'u32[72,128]{1,0:T(1,128)}', space=vmem, size = 0x9000, scoped, tag = 'internal scratch']
  %s0 = inlined_call_operand.vmem [shape: f32[256,8], index: 0, kind: input, shape index: {}]
  %s1 = inlined_call_operand.vmem [shape: f32[8,128], index: 1, kind: input, shape index: {}]
  %s2 = inlined_call_operand.vmem [shape: f32[1,128], index: 2, kind: input, shape index: {}]
  %s3 = inlined_call_operand.vmem [shape: bf16[128,128], index: 3, kind: input, shape index: {}]
  %s4 = inlined_call_operand.vmem [shape: f32[1,128], index: 4, kind: input, shape index: {}]
  %s5 = inlined_call_operand.vmem [shape: bf16[128,128], index: 5, kind: input, shape index: {}]
  %s6 = inlined_call_operand.vmem [shape: f32[1,128], index: 6, kind: input, shape index: {}]
  %s7 = inlined_call_operand.vmem [shape: bf16[8,128], index: 7, kind: input, shape index: {}]
  %s8 = inlined_call_operand.vmem [shape: f32[8,1], index: 8, kind: input, shape index: {}]
  %s9 = inlined_call_operand.vmem [shape: bf16[8,256], index: 9, kind: output, shape index: {}]
  %s10 = sld [smem:[#allocation0]]
  $region69: #{deep_network_forward.1} parent=0
    _
  %s12 = ssub.s32 1, %s10
  %s13 = scalar_select 0, %s12, %s10
  loop: start=0, step=1, limit=4
  $region2: #{deep_network_forward.1} parent=0 // loop_pre_header
    _
  $region3: #{deep_network_forward.1} parent=0 // loop_header
    %s15 = sphi 0, %s19
    %p16 = scmp.ge.s32.totalorder %s15, 4
    %s25 = sphi 0, %s27
    %s28 = sphi 0, %s25
    %s29 = sphi 0, %s28
    %s45 = sphi 0, %s29
    %s49 = sphi 0, %s49
    %s51 = sphi 0, %s49
    %s52 = sphi 0, %s51
    %s66 = sphi 0, %s52
    %s70 = sphi 0, %s70
    %s72 = sphi 0, %s70
    %s73 = sphi 0, %s72
    %s87 = sphi 0, %s73
    %s91 = sphi 0, %s91
    %s93 = sphi 0, %s91
    %s94 = sphi 0, %s93
    %s108 = sphi 0, %s94
    %s112 = sphi 0, %s112
    %s114 = sphi 0, %s112
    %s115 = sphi 0, %s114
    %s129 = sphi 0, %s115
    %s133 = sphi 0, %s133
    %s135 = sphi 0, %s133
    %s136 = sphi 0, %s135
    %s150 = sphi 0, %s136
    %s154 = sphi 0, %s154
    %s156 = sphi 0, %s154
    %s157 = sphi 0, %s156
    %s171 = sphi 0, %s157
    %s175 = sphi 0, %s175
    %s177 = sphi 0, %s175
    %s178 = sphi 0, %s177
    %s192 = sphi 0, %s178
    %s196 = sphi 0, %s196
    %s198 = sphi 0, %s196
    %s199 = sphi 0, %s198
    %s213 = sphi 0, %s199
    %s219 = sphi 0, %s221
    %s222 = sphi 0, %s219
    %s223 = sphi 0, %s222
    %s239 = sphi 0, %s223
  $region4: #{deep_network_forward.1} parent=0 // loop_header_branch
    %18 = sbr.rel (%p16) target = $region8
  $region5: #{deep_network_forward.1} parent=0 // loop_body
    %s20 = ssub.s32 %s15, 1
    %s21 = ssub.s32 %s15, 2
    %s22 = sadd.s32 %s15, 1
    %s23 = ssub.s32 %s15, %s22
    %p24 = scmp.eq.s32.totalorder %s23, 0
    %s26 = sadd.s32 %s25, 1
    %s27 = scalar_select %p24, %s25, %s26
    %p30 = pneg %p24
    %p31 = scmp.eq.s32.totalorder %s15, 1
    %p32 = por %p30, %p31
    %p33 = scmp.ne.s32.totalorder %s25, %s28
    %p34 = scmp.eq.s32.totalorder %s15, 0
    %p35 = por %p33, %p34
    %p36 = scmp.ne.s32.totalorder %s25, %s28
    %p37 = scmp.eq.s32.totalorder %s20, 1
    %p38 = por %p36, %p37
    %p39 = scmp.ne.s32.totalorder %s28, %s29
    %p40 = scmp.eq.s32.totalorder %s20, 0
    %p41 = por %p39, %p40
    %p42 = scmp.ne.s32.totalorder %s28, %s29
    %p43 = scmp.eq.s32.totalorder %s21, 1
    %p44 = por %p42, %p43
    %p46 = scmp.ne.s32.totalorder %s29, %s45
    %p47 = scmp.eq.s32.totalorder %s21, 0
    %p48 = por %p46, %p47
    %s50 = sadd.s32 %s49, 1
    %p53 = scmp.eq.s32.totalorder %s15, 1
    %p54 = scmp.ne.s32.totalorder %s49, %s51
    %p55 = scmp.eq.s32.totalorder %s15, 0
    %p56 = por %p54, %p55
    %p57 = scmp.ne.s32.totalorder %s49, %s51
    %p58 = scmp.eq.s32.totalorder %s20, 1
    %p59 = por %p57, %p58
    %p60 = scmp.ne.s32.totalorder %s51, %s52
    %p61 = scmp.eq.s32.totalorder %s20, 0
    %p62 = por %p60, %p61
    %p63 = scmp.ne.s32.totalorder %s51, %s52
    %p64 = scmp.eq.s32.totalorder %s21, 1
    %p65 = por %p63, %p64
    %p67 = scmp.ne.s32.totalorder %s52, %s66
    %p68 = scmp.eq.s32.totalorder %s21, 0
    %p69 = por %p67, %p68
    %s71 = sadd.s32 %s70, 1
    %p74 = scmp.eq.s32.totalorder %s15, 1
    %p75 = scmp.ne.s32.totalorder %s70, %s72
    %p76 = scmp.eq.s32.totalorder %s15, 0
    %p77 = por %p75, %p76
    %p78 = scmp.ne.s32.totalorder %s70, %s72
    %p79 = scmp.eq.s32.totalorder %s20, 1
    %p80 = por %p78, %p79
    %p81 = scmp.ne.s32.totalorder %s72, %s73
    %p82 = scmp.eq.s32.totalorder %s20, 0
    %p83 = por %p81, %p82
    %p84 = scmp.ne.s32.totalorder %s72, %s73
    %p85 = scmp.eq.s32.totalorder %s21, 1
    %p86 = por %p84, %p85
    %p88 = scmp.ne.s32.totalorder %s73, %s87
    %p89 = scmp.eq.s32.totalorder %s21, 0
    %p90 = por %p88, %p89
    %s92 = sadd.s32 %s91, 1
    %p95 = scmp.eq.s32.totalorder %s15, 1
    %p96 = scmp.ne.s32.totalorder %s91, %s93
    %p97 = scmp.eq.s32.totalorder %s15, 0
    %p98 = por %p96, %p97
    %p99 = scmp.ne.s32.totalorder %s91, %s93
    %p100 = scmp.eq.s32.totalorder %s20, 1
    %p101 = por %p99, %p100
    %p102 = scmp.ne.s32.totalorder %s93, %s94
    %p103 = scmp.eq.s32.totalorder %s20, 0
    %p104 = por %p102, %p103
    %p105 = scmp.ne.s32.totalorder %s93, %s94
    %p106 = scmp.eq.s32.totalorder %s21, 1
    %p107 = por %p105, %p106
    %p109 = scmp.ne.s32.totalorder %s94, %s108
    %p110 = scmp.eq.s32.totalorder %s21, 0
    %p111 = por %p109, %p110
    %s113 = sadd.s32 %s112, 1
    %p116 = scmp.eq.s32.totalorder %s15, 1
    %p117 = scmp.ne.s32.totalorder %s112, %s114
    %p118 = scmp.eq.s32.totalorder %s15, 0
    %p119 = por %p117, %p118
    %p120 = scmp.ne.s32.totalorder %s112, %s114
    %p121 = scmp.eq.s32.totalorder %s20, 1
    %p122 = por %p120, %p121
    %p123 = scmp.ne.s32.totalorder %s114, %s115
    %p124 = scmp.eq.s32.totalorder %s20, 0
    %p125 = por %p123, %p124
    %p126 = scmp.ne.s32.totalorder %s114, %s115
    %p127 = scmp.eq.s32.totalorder %s21, 1
    %p128 = por %p126, %p127
    %p130 = scmp.ne.s32.totalorder %s115, %s129
    %p131 = scmp.eq.s32.totalorder %s21, 0
    %p132 = por %p130, %p131
    %s134 = sadd.s32 %s133, 1
    %p137 = scmp.eq.s32.totalorder %s15, 1
    %p138 = scmp.ne.s32.totalorder %s133, %s135
    %p139 = scmp.eq.s32.totalorder %s15, 0
    %p140 = por %p138, %p139
    %p141 = scmp.ne.s32.totalorder %s133, %s135
    %p142 = scmp.eq.s32.totalorder %s20, 1
    %p143 = por %p141, %p142
    %p144 = scmp.ne.s32.totalorder %s135, %s136
    %p145 = scmp.eq.s32.totalorder %s20, 0
    %p146 = por %p144, %p145
    %p147 = scmp.ne.s32.totalorder %s135, %s136
    %p148 = scmp.eq.s32.totalorder %s21, 1
    %p149 = por %p147, %p148
    %p151 = scmp.ne.s32.totalorder %s136, %s150
    %p152 = scmp.eq.s32.totalorder %s21, 0
    %p153 = por %p151, %p152
    %s155 = sadd.s32 %s154, 1
    %p158 = scmp.eq.s32.totalorder %s15, 1
    %p159 = scmp.ne.s32.totalorder %s154, %s156
    %p160 = scmp.eq.s32.totalorder %s15, 0
    %p161 = por %p159, %p160
    %p162 = scmp.ne.s32.totalorder %s154, %s156
    %p163 = scmp.eq.s32.totalorder %s20, 1
    %p164 = por %p162, %p163
    %p165 = scmp.ne.s32.totalorder %s156, %s157
    %p166 = scmp.eq.s32.totalorder %s20, 0
    %p167 = por %p165, %p166
    %p168 = scmp.ne.s32.totalorder %s156, %s157
    %p169 = scmp.eq.s32.totalorder %s21, 1
    %p170 = por %p168, %p169
    %p172 = scmp.ne.s32.totalorder %s157, %s171
    %p173 = scmp.eq.s32.totalorder %s21, 0
    %p174 = por %p172, %p173
    %s176 = sadd.s32 %s175, 1
    %p179 = scmp.eq.s32.totalorder %s15, 1
    %p180 = scmp.ne.s32.totalorder %s175, %s177
    %p181 = scmp.eq.s32.totalorder %s15, 0
    %p182 = por %p180, %p181
    %p183 = scmp.ne.s32.totalorder %s175, %s177
    %p184 = scmp.eq.s32.totalorder %s20, 1
    %p185 = por %p183, %p184
    %p186 = scmp.ne.s32.totalorder %s177, %s178
    %p187 = scmp.eq.s32.totalorder %s20, 0
    %p188 = por %p186, %p187
    %p189 = scmp.ne.s32.totalorder %s177, %s178
    %p190 = scmp.eq.s32.totalorder %s21, 1
    %p191 = por %p189, %p190
    %p193 = scmp.ne.s32.totalorder %s178, %s192
    %p194 = scmp.eq.s32.totalorder %s21, 0
    %p195 = por %p193, %p194
    %s197 = sadd.s32 %s196, 1
    %p200 = scmp.eq.s32.totalorder %s15, 1
    %p201 = scmp.ne.s32.totalorder %s196, %s198
    %p202 = scmp.eq.s32.totalorder %s15, 0
    %p203 = por %p201, %p202
    %p204 = scmp.ne.s32.totalorder %s196, %s198
    %p205 = scmp.eq.s32.totalorder %s20, 1
    %p206 = por %p204, %p205
    %p207 = scmp.ne.s32.totalorder %s198, %s199
    %p208 = scmp.eq.s32.totalorder %s20, 0
    %p209 = por %p207, %p208
    %p210 = scmp.ne.s32.totalorder %s198, %s199
    %p211 = scmp.eq.s32.totalorder %s21, 1
    %p212 = por %p210, %p211
    %p214 = scmp.ne.s32.totalorder %s199, %s213
    %p215 = scmp.eq.s32.totalorder %s21, 0
    %p216 = por %p214, %p215
    %s217 = ssub.s32 %s15, %s22
    %p218 = scmp.eq.s32.totalorder %s217, 0
    %s220 = sadd.s32 %s219, 1
    %s221 = scalar_select %p218, %s219, %s220
    %p224 = pneg %p218
    %p225 = scmp.eq.s32.totalorder %s15, 1
    %p226 = por %p224, %p225
    %p227 = scmp.ne.s32.totalorder %s219, %s222
    %p228 = scmp.eq.s32.totalorder %s15, 0
    %p229 = por %p227, %p228
    %p230 = scmp.ne.s32.totalorder %s219, %s222
    %p231 = scmp.eq.s32.totalorder %s20, 1
    %p232 = por %p230, %p231
    %p233 = scmp.ne.s32.totalorder %s222, %s223
    %p234 = scmp.eq.s32.totalorder %s20, 0
    %p235 = por %p233, %p234
    %p236 = scmp.ne.s32.totalorder %s222, %s223
    %p237 = scmp.eq.s32.totalorder %s21, 1
    %p238 = por %p236, %p237
    %p240 = scmp.ne.s32.totalorder %s223, %s239
    %p241 = scmp.eq.s32.totalorder %s21, 0
    %p242 = por %p240, %p241
    %p243 = scmp.le.s32.totalorder 1, %s15
    %p244 = scmp.lt.s32.totalorder %s15, 3
    %p245 = pnand %p243, %p244
    %p246 = pneg %p245
    // Predicated region
    $region9: #{deep_network_forward.1} parent=5 // pred_check
      _
    $region10: #{deep_network_forward.1} parent=5 // pred_check_branch
      %248 = sbr.rel (%p245) target = $region12
    $region11: #{deep_network_forward.1} parent=5 // pred_region
      %s249 = ssub.s32 %s15, 1
      // Predicated region
      $region13: #{deep_network_forward.1} parent=11 // pred_check
        %p250 = pneg %p62
      $region14: #{deep_network_forward.1} parent=11 // pred_check_branch
        %252 = sbr.rel (%p250) target = $region16
      $region15: #{deep_network_forward.1} parent=11 // pred_region
        _
      $region16: #{deep_network_forward.1} parent=11 // pred_fallthru
        _
      // Predicated region
      $region17: #{deep_network_forward.1} parent=11 // pred_check
        %p253 = pneg %p83
      $region18: #{deep_network_forward.1} parent=11 // pred_check_branch
        %255 = sbr.rel (%p253) target = $region20
      $region19: #{deep_network_forward.1} parent=11 // pred_region
        _
      $region20: #{deep_network_forward.1} parent=11 // pred_fallthru
        _
      // Predicated region
      $region21: #{deep_network_forward.1} parent=11 // pred_check
        %p256 = pneg %p104
      $region22: #{deep_network_forward.1} parent=11 // pred_check_branch
        %258 = sbr.rel (%p256) target = $region24
      $region23: #{deep_network_forward.1} parent=11 // pred_region
        _
      $region24: #{deep_network_forward.1} parent=11 // pred_fallthru
        _
      // Predicated region
      $region25: #{deep_network_forward.1} parent=11 // pred_check
        %p259 = pneg %p125
      $region26: #{deep_network_forward.1} parent=11 // pred_check_branch
        %261 = sbr.rel (%p259) target = $region28
      $region27: #{deep_network_forward.1} parent=11 // pred_region
        _
      $region28: #{deep_network_forward.1} parent=11 // pred_fallthru
        _
      // Predicated region
      $region29: #{deep_network_forward.1} parent=11 // pred_check
        %p262 = pneg %p146
      $region30: #{deep_network_forward.1} parent=11 // pred_check_branch
        %264 = sbr.rel (%p262) target = $region32
      $region31: #{deep_network_forward.1} parent=11 // pred_region
        _
      $region32: #{deep_network_forward.1} parent=11 // pred_fallthru
        _
      // Predicated region
      $region33: #{deep_network_forward.1} parent=11 // pred_check
        %p265 = pneg %p167
      $region34: #{deep_network_forward.1} parent=11 // pred_check_branch
        %267 = sbr.rel (%p265) target = $region36
      $region35: #{deep_network_forward.1} parent=11 // pred_region
        _
      $region36: #{deep_network_forward.1} parent=11 // pred_fallthru
        _
      // Predicated region
      $region37: #{deep_network_forward.1} parent=11 // pred_check
        %p268 = pneg %p188
      $region38: #{deep_network_forward.1} parent=11 // pred_check_branch
        %270 = sbr.rel (%p268) target = $region40
      $region39: #{deep_network_forward.1} parent=11 // pred_region
        _
      $region40: #{deep_network_forward.1} parent=11 // pred_fallthru
        _
      // Predicated region
      $region41: #{deep_network_forward.1} parent=11 // pred_check
        %p271 = pneg %p209
      $region42: #{deep_network_forward.1} parent=11 // pred_check_branch
        %273 = sbr.rel (%p271) target = $region44
      $region43: #{deep_network_forward.1} parent=11 // pred_region
        _
      $region44: #{deep_network_forward.1} parent=11 // pred_fallthru
        _
    $region12: #{deep_network_forward.1} parent=5 // pred_fallthru
      _
    %p274 = scmp.lt.s32.totalorder %s15, 2
    // Predicated region
    $region45: #{deep_network_forward.1} parent=5 // pred_check
      %p275 = pneg %p274
    $region46: #{deep_network_forward.1} parent=5 // pred_check_branch
      %277 = sbr.rel (%p275) target = $region48
    $region47: #{deep_network_forward.1} parent=5 // pred_region
      // Predicated region
      $region49: #{deep_network_forward.1} parent=47 // pred_check
        %p278 = pneg %p35
      $region50: #{deep_network_forward.1} parent=47 // pred_check_branch
        %280 = sbr.rel (%p278) target = $region52
      $region51: #{deep_network_forward.1} parent=47 // pred_region
        %s281 = smul.u32 16, %s15
        %p282 = scmp.lt.s32.totalorder %s281, 31
        %s283 = scalar_select %p282, %s281, 31
        %s284 = smul.addr %s283, 8
        %s285 = scalar_lea.vmem %s0, %s284
        %s286 = smul.u32 16, %s15
      $region52: #{deep_network_forward.1} parent=47 // pred_fallthru
        _
    $region48: #{deep_network_forward.1} parent=5 // pred_fallthru
      _
    %p287 = scmp.le.s32.totalorder 1, %s15
    %p288 = scmp.lt.s32.totalorder %s15, 3
    %p289 = pnand %p287, %p288
    %p290 = pneg %p289
    // Predicated region
    $region53: #{deep_network_forward.1} parent=5 // pred_check
      _
    $region54: #{deep_network_forward.1} parent=5 // pred_check_branch
      %292 = sbr.rel (%p289) target = $region56
    $region55: #{deep_network_forward.1} parent=5 // pred_region
      %s293 = ssub.s32 %s15, 1
      %s294 = smul.u32 16, %s20
      %p295 = scmp.lt.s32.totalorder %s294, 31
      %s296 = scalar_select %p295, %s294, 31
      %s297 = smul.addr %s296, 8
      %s298 = scalar_lea.vmem %s0, %s297
      %p299 = pneg %p41
      %p300 = pneg %p38
      %p301 = pneg %p62
      %p302 = pneg %p59
      %p303 = pneg %p83
      %p304 = pneg %p80
      %p305 = pneg %p104
      %p306 = pneg %p101
      %p307 = pneg %p125
      %p308 = pneg %p122
      %p309 = pneg %p146
      %p310 = pneg %p143
      %p311 = pneg %p167
      %p312 = pneg %p164
      %p313 = pneg %p188
      %p314 = pneg %p185
      %p315 = pneg %p209
      %p316 = pneg %p206
      %p317 = pneg %p235
      %p318 = pneg %p232
      %p319 = scmp.lt.s32.totalorder %s20, 1
      %s320 = scalar_select %p319, %s20, 1
      %s321 = smul.addr %s320, 4
      %s322 = scalar_lea.vmem %s9, %s321
      %s323 = smul.u32 16, %s20
      %p324 = scmp.lt.s32.totalorder %s323, 31
      %s325 = scalar_select %p324, %s323, 31
      %s326 = smul.addr %s325, 8
      %s327 = scalar_lea.vmem %s0, %s326
      %s328 = smul.u32 16, %s20
      %p329 = scmp.lt.s32.totalorder %s20, 1
      %s330 = scalar_select %p329, %s20, 1
      %s331 = smul.addr %s330, 4
      %s332 = scalar_lea.vmem %s9, %s331
      %v333 = vld [vmem:[%s327] sm:$0xff]
      %v334 = vld [vmem:[%s327 + $0x8] sm:$0xff]
      %v335 = vld [vmem:[%s327 + $0x10] sm:$0xff]
      %v336 = vld [vmem:[%s327 + $0x18] sm:$0xff]
      %v337 = vld [vmem:[%s327 + $0x20] sm:$0xff]
      %v338 = vld [vmem:[%s327 + $0x28] sm:$0xff]
      %v339 = vld [vmem:[%s327 + $0x30] sm:$0xff]
      %v340 = vld [vmem:[%s327 + $0x38] sm:$0xff]
      %v341 = vld [vmem:[%s327 + $0x40] sm:$0xff]
      %v342 = vld [vmem:[%s327 + $0x48] sm:$0xff]
      %v343 = vld [vmem:[%s327 + $0x50] sm:$0xff]
      %v344 = vld [vmem:[%s327 + $0x58] sm:$0xff]
      %v345 = vld [vmem:[%s327 + $0x60] sm:$0xff]
      %v346 = vld [vmem:[%s327 + $0x68] sm:$0xff]
      %v347 = vld [vmem:[%s327 + $0x70] sm:$0xff]
      %v348 = vld [vmem:[%s327 + $0x78] sm:$0xff]
      %v349 = vld [vmem:[%s1] sm:$0xff]
      %v350 = vld [vmem:[%s2] sm:$0x1]
      %v352 = vperm.slane %v350, 0
      %vm354 = vcmask 64512
      %v356 = vsel %vm354, %v333, 0
      %v359 = vsel %vm354, %v334, 0
      %v362 = vsel %vm354, %v335, 0
      %v365 = vsel %vm354, %v336, 0
      %v368 = vsel %vm354, %v337, 0
      %v371 = vsel %vm354, %v338, 0
      %v374 = vsel %vm354, %v339, 0
      %v377 = vsel %vm354, %v340, 0
      %v380 = vsel %vm354, %v341, 0
      %v383 = vsel %vm354, %v342, 0
      %v386 = vsel %vm354, %v343, 0
      %v389 = vsel %vm354, %v344, 0
      %v392 = vsel %vm354, %v345, 0
      %v395 = vsel %vm354, %v346, 0
      %v398 = vsel %vm354, %v347, 0
      %v401 = vsel %vm354, %v348, 0
      %403 = vmatpush.msra.mxu0 0.0
      %404 = vmatpush.msra.mxu0 0.0
      %405 = vmatpush.msra.mxu0 0.0
      %406 = vmatpush.msra.mxu0 0.0
      %407 = vmatpush.msra.mxu0 0.0
      %408 = vmatpush.msra.mxu0 0.0
      %409 = vmatpush.msra.mxu0 0.0
      %410 = vmatpush.msra.mxu0 0.0
      %411 = vmatpush.msra.mxu0 0.0
      %412 = vmatpush.msra.mxu0 0.0
      %413 = vmatpush.msra.mxu0 0.0
      %414 = vmatpush.msra.mxu0 0.0
      %415 = vmatpush.msra.mxu0 0.0
      %416 = vmatpush.msra.mxu0 0.0
      %417 = vmatpush.msra.mxu0 0.0
      %418 = vmatpush.msra.mxu0 %v349
      %419 = vmatmul.f32.gmra.mxu0 %v356
      %v420 = vpop.f32.mrf.mxu0
      %v421 = vadd.f32 %v352, %v420
      %422 = vmatmul.f32.gmra.mxu0 %v359
      %v423 = vpop.f32.mrf.mxu0
      %v424 = vadd.f32 %v352, %v423
      %425 = vmatmul.f32.gmra.mxu0 %v362
      %v426 = vpop.f32.mrf.mxu0
      %v427 = vadd.f32 %v352, %v426
      %428 = vmatmul.f32.gmra.mxu0 %v365
      %v429 = vpop.f32.mrf.mxu0
      %v430 = vadd.f32 %v352, %v429
      %431 = vmatmul.f32.gmra.mxu0 %v368
      %v432 = vpop.f32.mrf.mxu0
      %v433 = vadd.f32 %v352, %v432
      %434 = vmatmul.f32.gmra.mxu0 %v371
      %v435 = vpop.f32.mrf.mxu0
      %v436 = vadd.f32 %v352, %v435
      %437 = vmatmul.f32.gmra.mxu0 %v374
      %v438 = vpop.f32.mrf.mxu0
      %v439 = vadd.f32 %v352, %v438
      %440 = vmatmul.f32.gmra.mxu0 %v377
      %v441 = vpop.f32.mrf.mxu0
      %v442 = vadd.f32 %v352, %v441
      %443 = vmatmul.f32.gmra.mxu0 %v380
      %v444 = vpop.f32.mrf.mxu0
      %v445 = vadd.f32 %v352, %v444
      %446 = vmatmul.f32.gmra.mxu0 %v383
      %v447 = vpop.f32.mrf.mxu0
      %v448 = vadd.f32 %v352, %v447
      %449 = vmatmul.f32.gmra.mxu0 %v386
      %v450 = vpop.f32.mrf.mxu0
      %v451 = vadd.f32 %v352, %v450
      %452 = vmatmul.f32.gmra.mxu0 %v389
      %v453 = vpop.f32.mrf.mxu0
      %v454 = vadd.f32 %v352, %v453
      %455 = vmatmul.f32.gmra.mxu0 %v392
      %v456 = vpop.f32.mrf.mxu0
      %v457 = vadd.f32 %v352, %v456
      %458 = vmatmul.f32.gmra.mxu0 %v395
      %v459 = vpop.f32.mrf.mxu0
      %v460 = vadd.f32 %v352, %v459
      %461 = vmatmul.f32.gmra.mxu0 %v398
      %v462 = vpop.f32.mrf.mxu0
      %v463 = vadd.f32 %v352, %v462
      %464 = vmatmul.f32.gmra.mxu0 %v401
      %v465 = vpop.f32.mrf.mxu0
      %v466 = vadd.f32 %v352, %v465
      %467 = vdwg.mxu0
      %v468 = vmax.f32 %v421, 0.0
      %v469 = vmax.f32 %v424, 0.0
      %v470 = vmax.f32 %v427, 0.0
      %v471 = vmax.f32 %v430, 0.0
      %v472 = vmax.f32 %v433, 0.0
      %v473 = vmax.f32 %v436, 0.0
      %v474 = vmax.f32 %v439, 0.0
      %v475 = vmax.f32 %v442, 0.0
      %v476 = vmax.f32 %v445, 0.0
      %v477 = vmax.f32 %v448, 0.0
      %v478 = vmax.f32 %v451, 0.0
      %v479 = vmax.f32 %v454, 0.0
      %v480 = vmax.f32 %v457, 0.0
      %v481 = vmax.f32 %v460, 0.0
      %v482 = vmax.f32 %v463, 0.0
      %v483 = vmax.f32 %v466, 0.0
      %v484 = vpack.c.bf16 %v469, %v468
      %v485 = vpack.c.bf16 %v471, %v470
      %v486 = vpack.c.bf16 %v473, %v472
      %v487 = vpack.c.bf16 %v475, %v474
      %v488 = vpack.c.bf16 %v477, %v476
      %v489 = vpack.c.bf16 %v479, %v478
      %v490 = vpack.c.bf16 %v481, %v480
      %v491 = vpack.c.bf16 %v483, %v482
      %v492 = vld [vmem:[%s3] sm:$0xf]
      %v493 = vld [vmem:[%s3 + $0x4] sm:$0xf]
      %v494 = vld [vmem:[%s3 + $0x8] sm:$0xf]
      %v495 = vld [vmem:[%s3 + $0xc] sm:$0xf]
      %v496 = vld [vmem:[%s3 + $0x10] sm:$0xf]
      %v497 = vld [vmem:[%s3 + $0x14] sm:$0xf]
      %v498 = vld [vmem:[%s3 + $0x18] sm:$0xf]
      %v499 = vld [vmem:[%s3 + $0x1c] sm:$0xf]
      %v500 = vld [vmem:[%s3 + $0x20] sm:$0xf]
      %v501 = vld [vmem:[%s3 + $0x24] sm:$0xf]
      %v502 = vld [vmem:[%s3 + $0x28] sm:$0xf]
      %v503 = vld [vmem:[%s3 + $0x2c] sm:$0xf]
      %v504 = vld [vmem:[%s3 + $0x30] sm:$0xf]
      %v505 = vld [vmem:[%s3 + $0x34] sm:$0xf]
      %v506 = vld [vmem:[%s3 + $0x38] sm:$0xf]
      %v507 = vld [vmem:[%s3 + $0x3c] sm:$0xf]
      %v508 = vld [vmem:[%s4] sm:$0x1]
      %v510 = vperm.slane %v508, 0
      %v528 = vunpack.c.l.b16 %v492
      %v529 = vunpack.c.l.b16 %v493
      %v530 = vunpack.c.l.b16 %v494
      %v531 = vunpack.c.l.b16 %v495
      %v532 = vunpack.c.l.b16 %v496
      %v533 = vunpack.c.l.b16 %v497
      %v534 = vunpack.c.l.b16 %v498
      %v535 = vunpack.c.l.b16 %v499
      %v536 = vunpack.c.l.b16 %v500
      %v537 = vunpack.c.l.b16 %v501
      %v538 = vunpack.c.l.b16 %v502
      %v539 = vunpack.c.l.b16 %v503
      %v540 = vunpack.c.l.b16 %v504
      %v541 = vunpack.c.l.b16 %v505
      %v542 = vunpack.c.l.b16 %v506
      %v543 = vunpack.c.l.b16 %v507
      %v544 = vpack.c.b16 %v529, %v528
      %v545 = vpack.c.b16 %v531, %v530
      %v546 = vpack.c.b16 %v533, %v532
      %v547 = vpack.c.b16 %v535, %v534
      %v548 = vpack.c.b16 %v537, %v536
      %v549 = vpack.c.b16 %v539, %v538
      %v550 = vpack.c.b16 %v541, %v540
      %v551 = vpack.c.b16 %v543, %v542
      %560 = vmatpush.bf16.msra.mxu0 %v551
      %561 = vmatpush.bf16.msra.mxu0 %v550
      %562 = vmatpush.bf16.msra.mxu0 %v549
      %563 = vmatpush.bf16.msra.mxu0 %v548
      %564 = vmatpush.bf16.msra.mxu0 %v547
      %565 = vmatpush.bf16.msra.mxu0 %v546
      %566 = vmatpush.bf16.msra.mxu0 %v545
      %567 = vmatpush.bf16.msra.mxu0 %v544
      %568 = vmatmul.bf16.gmra.mxu0 %v484
      %v569 = vpop.f32.mrf.mxu0
      %v570 = vadd.f32 %v510, %v569
      %v571 = vpop.f32.mrf.mxu0
      %v572 = vadd.f32 %v510, %v571
      %573 = vmatmul.bf16.gmra.mxu0 %v485
      %v574 = vpop.f32.mrf.mxu0
      %v575 = vadd.f32 %v510, %v574
      %v576 = vpop.f32.mrf.mxu0
      %v577 = vadd.f32 %v510, %v576
      %578 = vmatmul.bf16.gmra.mxu0 %v486
      %v579 = vpop.f32.mrf.mxu0
      %v580 = vadd.f32 %v510, %v579
      %v581 = vpop.f32.mrf.mxu0
      %v582 = vadd.f32 %v510, %v581
      %583 = vmatmul.bf16.gmra.mxu0 %v487
      %v584 = vpop.f32.mrf.mxu0
      %v585 = vadd.f32 %v510, %v584
      %v586 = vpop.f32.mrf.mxu0
      %v587 = vadd.f32 %v510, %v586
      %588 = vmatmul.bf16.gmra.mxu0 %v488
      %v589 = vpop.f32.mrf.mxu0
      %v590 = vadd.f32 %v510, %v589
      %v591 = vpop.f32.mrf.mxu0
      %v592 = vadd.f32 %v510, %v591
      %593 = vmatmul.bf16.gmra.mxu0 %v489
      %v594 = vpop.f32.mrf.mxu0
      %v595 = vadd.f32 %v510, %v594
      %v596 = vpop.f32.mrf.mxu0
      %v597 = vadd.f32 %v510, %v596
      %598 = vmatmul.bf16.gmra.mxu0 %v490
      %v599 = vpop.f32.mrf.mxu0
      %v600 = vadd.f32 %v510, %v599
      %v601 = vpop.f32.mrf.mxu0
      %v602 = vadd.f32 %v510, %v601
      %603 = vmatmul.bf16.gmra.mxu0 %v491
      %v604 = vpop.f32.mrf.mxu0
      %v605 = vadd.f32 %v510, %v604
      %v606 = vpop.f32.mrf.mxu0
      %v607 = vadd.f32 %v510, %v606
      %608 = vdwg.mxu0
      %v609 = vmax.f32 %v570, 0.0
      %v610 = vmax.f32 %v572, 0.0
      %v611 = vmax.f32 %v575, 0.0
      %v612 = vmax.f32 %v577, 0.0
      %v613 = vmax.f32 %v580, 0.0
      %v614 = vmax.f32 %v582, 0.0
      %v615 = vmax.f32 %v585, 0.0
      %v616 = vmax.f32 %v587, 0.0
      %v617 = vmax.f32 %v590, 0.0
      %v618 = vmax.f32 %v592, 0.0
      %v619 = vmax.f32 %v595, 0.0
      %v620 = vmax.f32 %v597, 0.0
      %v621 = vmax.f32 %v600, 0.0
      %v622 = vmax.f32 %v602, 0.0
      %v623 = vmax.f32 %v605, 0.0
      %v624 = vmax.f32 %v607, 0.0
      %v625 = vpack.c.bf16 %v610, %v609
      %v626 = vpack.c.bf16 %v612, %v611
      %v627 = vpack.c.bf16 %v614, %v613
      %v628 = vpack.c.bf16 %v616, %v615
      %v629 = vpack.c.bf16 %v618, %v617
      %v630 = vpack.c.bf16 %v620, %v619
      %v631 = vpack.c.bf16 %v622, %v621
      %v632 = vpack.c.bf16 %v624, %v623
      %v633 = vld [vmem:[%s5] sm:$0xf]
      %v634 = vld [vmem:[%s5 + $0x4] sm:$0xf]
      %v635 = vld [vmem:[%s5 + $0x8] sm:$0xf]
      %v636 = vld [vmem:[%s5 + $0xc] sm:$0xf]
      %v637 = vld [vmem:[%s5 + $0x10] sm:$0xf]
      %v638 = vld [vmem:[%s5 + $0x14] sm:$0xf]
      %v639 = vld [vmem:[%s5 + $0x18] sm:$0xf]
      %v640 = vld [vmem:[%s5 + $0x1c] sm:$0xf]
      %v641 = vld [vmem:[%s5 + $0x20] sm:$0xf]
      %v642 = vld [vmem:[%s5 + $0x24] sm:$0xf]
      %v643 = vld [vmem:[%s5 + $0x28] sm:$0xf]
      %v644 = vld [vmem:[%s5 + $0x2c] sm:$0xf]
      %v645 = vld [vmem:[%s5 + $0x30] sm:$0xf]
      %v646 = vld [vmem:[%s5 + $0x34] sm:$0xf]
      %v647 = vld [vmem:[%s5 + $0x38] sm:$0xf]
      %v648 = vld [vmem:[%s5 + $0x3c] sm:$0xf]
      %v649 = vld [vmem:[%s6] sm:$0x1]
      %v651 = vperm.slane %v649, 0
      %v669 = vunpack.c.l.b16 %v633
      %v670 = vunpack.c.l.b16 %v634
      %v671 = vunpack.c.l.b16 %v635
      %v672 = vunpack.c.l.b16 %v636
      %v673 = vunpack.c.l.b16 %v637
      %v674 = vunpack.c.l.b16 %v638
      %v675 = vunpack.c.l.b16 %v639
      %v676 = vunpack.c.l.b16 %v640
      %v677 = vunpack.c.l.b16 %v641
      %v678 = vunpack.c.l.b16 %v642
      %v679 = vunpack.c.l.b16 %v643
      %v680 = vunpack.c.l.b16 %v644
      %v681 = vunpack.c.l.b16 %v645
      %v682 = vunpack.c.l.b16 %v646
      %v683 = vunpack.c.l.b16 %v647
      %v684 = vunpack.c.l.b16 %v648
      %v685 = vpack.c.b16 %v670, %v669
      %v686 = vpack.c.b16 %v672, %v671
      %v687 = vpack.c.b16 %v674, %v673
      %v688 = vpack.c.b16 %v676, %v675
      %v689 = vpack.c.b16 %v678, %v677
      %v690 = vpack.c.b16 %v680, %v679
      %v691 = vpack.c.b16 %v682, %v681
      %v692 = vpack.c.b16 %v684, %v683
      %701 = vmatpush.bf16.msra.mxu0 %v692
      %702 = vmatpush.bf16.msra.mxu0 %v691
      %703 = vmatpush.bf16.msra.mxu0 %v690
      %704 = vmatpush.bf16.msra.mxu0 %v689
      %705 = vmatpush.bf16.msra.mxu0 %v688
      %706 = vmatpush.bf16.msra.mxu0 %v687
      %707 = vmatpush.bf16.msra.mxu0 %v686
      %708 = vmatpush.bf16.msra.mxu0 %v685
      %709 = vmatmul.bf16.gmra.mxu0 %v625
      %v710 = vpop.f32.mrf.mxu0
      %v711 = vadd.f32 %v651, %v710
      %v712 = vpop.f32.mrf.mxu0
      %v713 = vadd.f32 %v651, %v712
      %714 = vmatmul.bf16.gmra.mxu0 %v626
      %v715 = vpop.f32.mrf.mxu0
      %v716 = vadd.f32 %v651, %v715
      %v717 = vpop.f32.mrf.mxu0
      %v718 = vadd.f32 %v651, %v717
      %719 = vmatmul.bf16.gmra.mxu0 %v627
      %v720 = vpop.f32.mrf.mxu0
      %v721 = vadd.f32 %v651, %v720
      %v722 = vpop.f32.mrf.mxu0
      %v723 = vadd.f32 %v651, %v722
      %724 = vmatmul.bf16.gmra.mxu0 %v628
      %v725 = vpop.f32.mrf.mxu0
      %v726 = vadd.f32 %v651, %v725
      %v727 = vpop.f32.mrf.mxu0
      %v728 = vadd.f32 %v651, %v727
      %729 = vmatmul.bf16.gmra.mxu0 %v629
      %v730 = vpop.f32.mrf.mxu0
      %v731 = vadd.f32 %v651, %v730
      %v732 = vpop.f32.mrf.mxu0
      %v733 = vadd.f32 %v651, %v732
      %734 = vmatmul.bf16.gmra.mxu0 %v630
      %v735 = vpop.f32.mrf.mxu0
      %v736 = vadd.f32 %v651, %v735
      %v737 = vpop.f32.mrf.mxu0
      %v738 = vadd.f32 %v651, %v737
      %739 = vmatmul.bf16.gmra.mxu0 %v631
      %v740 = vpop.f32.mrf.mxu0
      %v741 = vadd.f32 %v651, %v740
      %v742 = vpop.f32.mrf.mxu0
      %v743 = vadd.f32 %v651, %v742
      %744 = vmatmul.bf16.gmra.mxu0 %v632
      %v745 = vpop.f32.mrf.mxu0
      %v746 = vadd.f32 %v651, %v745
      %v747 = vpop.f32.mrf.mxu0
      %v748 = vadd.f32 %v651, %v747
      %749 = vdwg.mxu0
      %v750 = vmax.f32 %v711, 0.0
      %v751 = vmax.f32 %v713, 0.0
      %v752 = vmax.f32 %v716, 0.0
      %v753 = vmax.f32 %v718, 0.0
      %v754 = vmax.f32 %v721, 0.0
      %v755 = vmax.f32 %v723, 0.0
      %v756 = vmax.f32 %v726, 0.0
      %v757 = vmax.f32 %v728, 0.0
      %v758 = vmax.f32 %v731, 0.0
      %v759 = vmax.f32 %v733, 0.0
      %v760 = vmax.f32 %v736, 0.0
      %v761 = vmax.f32 %v738, 0.0
      %v762 = vmax.f32 %v741, 0.0
      %v763 = vmax.f32 %v743, 0.0
      %v764 = vmax.f32 %v746, 0.0
      %v765 = vmax.f32 %v748, 0.0
      %v766 = vpack.c.bf16 %v751, %v750
      %v767 = vpack.c.bf16 %v753, %v752
      %v768 = vpack.c.bf16 %v755, %v754
      %v769 = vpack.c.bf16 %v757, %v756
      %v770 = vpack.c.bf16 %v759, %v758
      %v771 = vpack.c.bf16 %v761, %v760
      %v772 = vpack.c.bf16 %v763, %v762
      %v773 = vpack.c.bf16 %v765, %v764
      %v774 = vld [vmem:[%s7] sm:$0xf]
      %v775 = vld [vmem:[%s8] sm:$0xff]
      %777 = vset.pattern.permute.xlu0 0
      %778 = vperm.xlu0 %777, %v775
      %v779 = vpop.permute.xlu0 %778
      %781 = vmatpush.bf16.xpose.msra.mxu0 %v773
      %782 = vmatpush.bf16.xpose.msra.mxu0 %v772
      %783 = vmatpush.bf16.xpose.msra.mxu0 %v771
      %784 = vmatpush.bf16.xpose.msra.mxu0 %v770
      %785 = vmatpush.bf16.xpose.msra.mxu0 %v769
      %786 = vmatpush.bf16.xpose.msra.mxu0 %v768
      %787 = vmatpush.bf16.xpose.msra.mxu0 %v767
      %788 = vmatpush.bf16.xpose.msra.mxu0 %v766
      %789 = vmatmul.bf16.gmra.mxu0 %v774
      %v790 = vpop.f32.mrf.mxu0
      %v791 = vadd.f32 %v779, %v790
      %v792 = vpop.f32.mrf.mxu0
      %793 = vdwg.mxu0
      %v794 = vpack.c.bf16 %v791, %v791
      %795 = vst [vmem:[%s332] sm:$0xf] %v794
      %p796 = scmp.lt.s32.totalorder %s20, 1
      %s797 = scalar_select %p796, %s20, 1
      %s798 = smul.addr %s797, 4
      %s799 = scalar_lea.vmem %s9, %s798
      // Predicated region
      $region57: #{deep_network_forward.1} parent=55 // pred_check
        %p800 = pneg %p232
      $region58: #{deep_network_forward.1} parent=55 // pred_check_branch
        %802 = sbr.rel (%p800) target = $region60
      $region59: #{deep_network_forward.1} parent=55 // pred_region
        _
      $region60: #{deep_network_forward.1} parent=55 // pred_fallthru
        _
    $region56: #{deep_network_forward.1} parent=5 // pred_fallthru
      _
    %p803 = scmp.le.s32.totalorder 2, %s15
    // Predicated region
    $region61: #{deep_network_forward.1} parent=5 // pred_check
      %p804 = pneg %p803
    $region62: #{deep_network_forward.1} parent=5 // pred_check_branch
      %806 = sbr.rel (%p804) target = $region64
    $region63: #{deep_network_forward.1} parent=5 // pred_region
      %s807 = ssub.s32 %s15, 2
      // Predicated region
      $region65: #{deep_network_forward.1} parent=63 // pred_check
        %p808 = pneg %p238
      $region66: #{deep_network_forward.1} parent=63 // pred_check_branch
        %810 = sbr.rel (%p808) target = $region68
      $region67: #{deep_network_forward.1} parent=63 // pred_region
        %p811 = scmp.lt.s32.totalorder %s21, 1
        %s812 = scalar_select %p811, %s21, 1
        %s813 = smul.addr %s812, 4
        %s814 = scalar_lea.vmem %s9, %s813
      $region68: #{deep_network_forward.1} parent=63 // pred_fallthru
        _
    $region64: #{deep_network_forward.1} parent=5 // pred_fallthru
      _
  $region6: #{deep_network_forward.1} parent=0 // loop_footer
    %s19 = sadd.s32 1, %s15
  $region7: #{deep_network_forward.1} parent=0 // loop_footer_branch
    %14 = sbr.rel target = $region3
  $region8: #{deep_network_forward.1} parent=0 // loop_exit
    _

</llo_original>
